<compile_context>
chip_gen: v6e
topology: v6e:2x2x1
jax: 0.10.0
libtpu: 0.0.40
codegen_flags: <defaults>
</compile_context>

<pallas_src>
import jax
import jax.numpy as jnp
from jax.experimental import pallas as pl
from jax.experimental.pallas import tpu as pltpu

LANE = 128


def vanet_kernel(x_ref, w_ref, out_ref):
    # x_ref:   [bt, obs_dim]      raw observations (no wrapper padding)
    # w_ref:   [3, W, W]          packed (fc1 | fc2 | dueling head) weights+biases
    # out_ref: [bt, action_dim]   Q values
    obs_dim = x_ref.shape[1]
    act_dim = out_ref.shape[1]

    x = x_ref[...]
    w0 = w_ref[0]                                   # [W, W]
    w1_part = w0[:obs_dim, :]                       # [obs_dim, W]  fc1 weights
    b1_row = w0[obs_dim:obs_dim + 1, :]             # [1, W] b1 + 1.0 in the bias lane

    # Layer 0: fc1 (+ bias row; ReLU(1)=1 keeps the bias lane alive).
    h = jnp.dot(x, w1_part, preferred_element_type=jnp.float32)
    h = jnp.maximum(h + b1_row, 0.0)
    # Layer 1: fc2 (+ bias via the bias lane folded into slab[1]).
    h = jnp.maximum(jnp.dot(h, w_ref[1], preferred_element_type=jnp.float32), 0.0)
    # Layer 2: fused [fc_A | fc_V] + dueling combine, keep only the Q lanes.
    q = jnp.dot(h, w_ref[2], preferred_element_type=jnp.float32)
    out_ref[...] = q[:, :act_dim]


def init_vanet_params(key, obs_dim, hidden_dim, action_dim):
    """Mirror nn.Linear default init (uniform +-1/sqrt(fan_in)).

    Weights are stored transposed: [in_features, out_features].
    """
    ks = jax.random.split(key, 8)

    def linear(kw, kb, fan_in, fan_out):
        bound = 1.0 / jnp.sqrt(float(fan_in))
        w = jax.random.uniform(kw, (fan_in, fan_out), jnp.float32, -bound, bound)
        b = jax.random.uniform(kb, (fan_out,), jnp.float32, -bound, bound)
        return w, b

    w1, b1 = linear(ks[0], ks[1], obs_dim, hidden_dim)
    w2, b2 = linear(ks[2], ks[3], hidden_dim, hidden_dim)
    wA, bA = linear(ks[4], ks[5], hidden_dim, action_dim)
    wV, bV = linear(ks[6], ks[7], hidden_dim, 1)
    return dict(w1=w1, b1=b1, w2=w2, b2=b2, wA=wA, bA=bA, wV=wV, bV=bV)


def pack_vanet_params(params, obs_dim, hidden_dim, action_dim, width=LANE):
    """Pack fc1/fc2/fc_A/fc_V + biases + dueling combine into one [3,W,W] slab."""
    assert obs_dim + 1 <= width and hidden_dim + 1 <= width and action_dim + 1 <= width
    bias_lane = hidden_dim  # activation column that carries the constant 1.0
    slab = jnp.zeros((3, width, width), jnp.float32)

    # Layer 0: fc1 weights; row obs_dim is the bias row (b1 + bias-lane 1.0).
    slab = slab.at[0, :obs_dim, :hidden_dim].set(params["w1"])
    slab = slab.at[0, obs_dim, :hidden_dim].set(params["b1"])
    slab = slab.at[0, obs_dim, bias_lane].set(1.0)

    # Layer 1: fc2 (+ bias via bias-lane row, + bias-lane passthrough).
    slab = slab.at[1, :hidden_dim, :hidden_dim].set(params["w2"])
    slab = slab.at[1, hidden_dim, :hidden_dim].set(params["b2"])
    slab = slab.at[1, hidden_dim, bias_lane].set(1.0)

    # Layer 2: [fc_A | fc_V] with biases, pre-multiplied by the dueling combine
    # matrix M so that out = [A, V] @ M = V + A - mean(A).
    wav = jnp.concatenate([params["wA"], params["wV"]], axis=1)           # [H, act+1]
    bav = jnp.concatenate([params["bA"], params["bV"]], axis=0)[None, :]  # [1, act+1]
    head_aug = jnp.concatenate([wav, bav], axis=0)                        # [H+1, act+1]
    combine = jnp.concatenate(
        [jnp.eye(action_dim, dtype=jnp.float32) - 1.0 / action_dim,       # A part
         jnp.ones((1, action_dim), jnp.float32)],                         # V part
        axis=0)                                                           # [act+1, act]
    head = head_aug @ combine                                             # [H+1, act]
    slab = slab.at[2, :hidden_dim + 1, :action_dim].set(head)
    return slab


def vanet_forward(x, slab, action_dim, *, batch_tile=512, gridless_max_rows=2048):
    """x: [B, obs_dim] float32.  slab: packed [3, W, W] weights.  Returns Q [B, act]."""
    B, obs_dim = x.shape
    x = x.astype(jnp.float32)
    out_shape = jax.ShapeDtypeStruct((B, action_dim), jnp.float32)

    if B <= gridless_max_rows:
        # Small/medium batch: single gridless invocation, everything resident in
        # VMEM (< ~3 MiB at the 2048-row cap -> safe even under v5e's 16 MiB
        # default scoped VMEM).  No wrapper pad, no wrapper slice, no grid steps.
        return pl.pallas_call(
            vanet_kernel,
            out_shape=out_shape,
            grid=(),
            in_specs=[pl.BlockSpec((B, obs_dim), lambda: (0, 0)),
                      pl.BlockSpec(slab.shape, lambda: (0, 0, 0))],
            out_specs=pl.BlockSpec((B, action_dim), lambda: (0, 0)),
        )(x, slab)

    # Large batch: batch grid with big (>=512-row) tiles.  The "parallel" axis
    # shards rows across both TensorCores on v7x; on single-TC chips it is a
    # serial loop, which the gridless threshold above mostly avoids.  The slab's
    # constant index_map means it is DMA'd once and kept resident (no per-step
    # re-fetch).  Row-independent compute makes the masked boundary tile (when
    # batch_tile does not divide B) safe.
    grid = (pl.cdiv(B, batch_tile),)
    return pl.pallas_call(
        vanet_kernel,
        out_shape=out_shape,
        grid=grid,
        in_specs=[pl.BlockSpec((batch_tile, obs_dim), lambda i: (i, 0)),
                  pl.BlockSpec(slab.shape, lambda i: (0, 0, 0))],
        out_specs=pl.BlockSpec((batch_tile, action_dim), lambda i: (i, 0)),
        compiler_params=pltpu.CompilerParams(
            dimension_semantics=("parallel",)),
    )(x, slab)


def vanet_reference(x, params):
    h1 = jnp.maximum(x @ params["w1"] + params["b1"], 0.0)
    h2 = jnp.maximum(h1 @ params["w2"] + params["b2"], 0.0)
    A = h2 @ params["wA"] + params["bA"]
    V = h2 @ params["wV"] + params["bV"]
    return V + A - jnp.mean(A, axis=1, keepdims=True)


if __name__ == "__main__":
    # CartPole-v1 / VAnet: obs_dim=4, hidden_dim=32, action_dim=2
    obs_dim, hidden_dim, action_dim = 4, 32, 2

    key = jax.random.PRNGKey(0)
    pkey, xkey, xkey_big = jax.random.split(key, 3)
    params = init_vanet_params(pkey, obs_dim, hidden_dim, action_dim)
    slab = pack_vanet_params(params, obs_dim, hidden_dim, action_dim)

    # Small batch -> gridless path (no wrapper pad / slice, no grid overhead).
    batch = 8
    x = jax.random.normal(xkey, (batch, obs_dim), jnp.float32)
    q = jax.block_until_ready(vanet_forward(x, slab, action_dim))
    q_ref = vanet_reference(x, params)
    assert q.shape == (batch, action_dim), q.shape
    assert jnp.allclose(q, q_ref, atol=1e-4, rtol=1e-4), (
        f"max abs err = {jnp.max(jnp.abs(q - q_ref))}")

    # Larger batch -> exercise the 512-row batch-grid path (forced here by
    # setting gridless_max_rows=0; by default B=1024 would stay gridless).
    xb = jax.random.normal(xkey_big, (1024, obs_dim), jnp.float32)
    qb = jax.block_until_ready(
        vanet_forward(xb, slab, action_dim, batch_tile=512, gridless_max_rows=0))
    qb_ref = vanet_reference(xb, params)
    assert qb.shape == (1024, action_dim), qb.shape
    assert jnp.allclose(qb, qb_ref, atol=1e-4, rtol=1e-4), (
        f"max abs err = {jnp.max(jnp.abs(qb - qb_ref))}")

    print("KERNEL_OK")
</pallas_src>

<mosaic_0001>
module attributes {stable_mosaic.version = 11 : i64} {
  func.func @vanet_kernel(%arg0: memref<8x4xf32, #tpu.memory_space<vmem>>, %arg1: memref<3x128x128xf32, #tpu.memory_space<vmem>>, %arg2: memref<8x2xf32, #tpu.memory_space<vmem>>) attributes {dimension_semantics = [], scalar_prefetch = 0 : i64, scratch_operands = 0 : i64, tpu.core_type = #tpu.core_type<tc>} {
    %c0 = arith.constant 0 : index
    %c0_0 = arith.constant 0 : index
    %0 = vector.load %arg0[%c0, %c0_0] : memref<8x4xf32, #tpu.memory_space<vmem>>, vector<8x4xf32>
    %c0_1 = arith.constant 0 : index
    %c0_2 = arith.constant 0 : index
    %c0_3 = arith.constant 0 : index
    %1 = vector.load %arg1[%c0_1, %c0_2, %c0_3] : memref<3x128x128xf32, #tpu.memory_space<vmem>>, vector<1x128x128xf32>
    %2 = vector.shape_cast %1 : vector<1x128x128xf32> to vector<128x128xf32>
    %3 = vector.extract_strided_slice %2 {offsets = [0, 0], sizes = [4, 128], strides = [1, 1]} : vector<128x128xf32> to vector<4x128xf32>
    %4 = vector.extract_strided_slice %2 {offsets = [4, 0], sizes = [1, 128], strides = [1, 1]} : vector<128x128xf32> to vector<1x128xf32>
    %cst = arith.constant dense<0.000000e+00> : vector<8x128xf32>
    %5 = tpu.matmul %0, %3, %cst {dimension_numbers = #tpu.dot_dimension_numbers<[1], [0], [0], [1], [0, 0, 1, 1], [], []>} : vector<8x4xf32>, vector<4x128xf32>, vector<8x128xf32> -> vector<8x128xf32>
    %6 = vector.broadcast %4 : vector<1x128xf32> to vector<8x128xf32>
    %7 = arith.addf %5, %6 : vector<8x128xf32>
    %cst_4 = arith.constant 0.000000e+00 : f32
    %8 = vector.broadcast %cst_4 : f32 to vector<8x128xf32>
    %9 = arith.maximumf %7, %8 : vector<8x128xf32>
    %c1 = arith.constant 1 : index
    %c0_5 = arith.constant 0 : index
    %c0_6 = arith.constant 0 : index
    %10 = vector.load %arg1[%c1, %c0_5, %c0_6] : memref<3x128x128xf32, #tpu.memory_space<vmem>>, vector<1x128x128xf32>
    %11 = vector.shape_cast %10 : vector<1x128x128xf32> to vector<128x128xf32>
    %cst_7 = arith.constant dense<0.000000e+00> : vector<8x128xf32>
    %12 = tpu.matmul %9, %11, %cst_7 {dimension_numbers = #tpu.dot_dimension_numbers<[1], [0], [0], [1], [0, 0, 1, 1], [], []>} : vector<8x128xf32>, vector<128x128xf32>, vector<8x128xf32> -> vector<8x128xf32>
    %cst_8 = arith.constant 0.000000e+00 : f32
    %13 = vector.broadcast %cst_8 : f32 to vector<8x128xf32>
    %14 = arith.maximumf %12, %13 : vector<8x128xf32>
    %c2 = arith.constant 2 : index
    %c0_9 = arith.constant 0 : index
    %c0_10 = arith.constant 0 : index
    %15 = vector.load %arg1[%c2, %c0_9, %c0_10] : memref<3x128x128xf32, #tpu.memory_space<vmem>>, vector<1x128x128xf32>
    %16 = vector.shape_cast %15 : vector<1x128x128xf32> to vector<128x128xf32>
    %cst_11 = arith.constant dense<0.000000e+00> : vector<8x128xf32>
    %17 = tpu.matmul %14, %16, %cst_11 {dimension_numbers = #tpu.dot_dimension_numbers<[1], [0], [0], [1], [0, 0, 1, 1], [], []>} : vector<8x128xf32>, vector<128x128xf32>, vector<8x128xf32> -> vector<8x128xf32>
    %18 = vector.extract_strided_slice %17 {offsets = [0, 0], sizes = [8, 2], strides = [1, 1]} : vector<8x128xf32> to vector<8x2xf32>
    %c0_12 = arith.constant 0 : index
    %c0_13 = arith.constant 0 : index
    %19 = vector.load %arg2[%c0_12, %c0_13] : memref<8x2xf32, #tpu.memory_space<vmem>>, vector<8x2xf32>
    tpu.vector_store %arg2[%c0_12, %c0_13], %18 {strides = array<i32>} : memref<8x2xf32, #tpu.memory_space<vmem>>, vector<8x2xf32>,
    return
  }
}

</mosaic_0001>

<llo_original>
// kernel: tpu_custom_call.1
$region0: #{tpu_custom_call.1}
  #allocation0 [shape = 'u32[]', space=smem, size = 0x4, offset = 0x4, fixed_abs, tag = 'smem constant byte address 0x4 - core index']
  #allocation1 [shape = 'u32[144,128]{1,0:T(1,128)}', space=vmem, size = 0x12000, scoped, tag = 'internal scratch']
  %s0 = inlined_call_operand.vmem [shape: f32[8,4], index: 0, kind: input, shape index: {}]
  %s1 = inlined_call_operand.hbm [shape: f32[3,128,128], index: 1, kind: input, shape index: {}]
  %s2 = inlined_call_operand.vmem [shape: f32[8,2], index: 2, kind: output, shape index: {}]
  %s3 = sld [smem:[#allocation0]]
  $region22: #{tpu_custom_call.1} parent=0
    _
  %s5 = ssub.s32 1, %s3
  %s6 = scalar_select 0, %s5, %s3
  $region1: #{tpu_custom_call.1} parent=0
    #allocation2 [shape = 'u8[196608]{0}', space=vmem, size = 0x30000, scoped, tag = 'input window, operand 1, single buffered']
    #allocation3 [shape = 's32[1]{0}', space=sflag, size = 0x4, scoped, tag = 'scoped memory for tpu_custom_call.1']
    %7 = vsyncpa [#allocation3], 0
    // Predicated region
    $region2: #{tpu_custom_call.1} parent=1 // pred_check
      _
    $region3: #{tpu_custom_call.1} parent=1 // pred_check_branch
      %9 = sbr.rel (0) target = $region5
    $region4: #{tpu_custom_call.1} parent=1 // pred_region
      _
    $region5: #{tpu_custom_call.1} parent=1 // pred_fallthru
      _
    // Predicated region
    $region6: #{tpu_custom_call.1} parent=1 // pred_check
      _
    $region7: #{tpu_custom_call.1} parent=1 // pred_check_branch
      %11 = sbr.rel (0) target = $region9
    $region8: #{tpu_custom_call.1} parent=1 // pred_region
      %s13 = ssub.s32 6144, 6144
      %14 = vsyncadd [#allocation3], %s13
      %s15 = sshll.u32 [#allocation2], 4
      %s16 = int_to_ptr.vmem [resolvable:$true] %s15
      %21 = dma.hbm_to_vmem [thread:$0]  %s1, 6144, %s16, [#allocation3], 128, 128, 8
    $region9: #{tpu_custom_call.1} parent=1 // pred_fallthru
      _
    // Predicated region
    $region10: #{tpu_custom_call.1} parent=1 // pred_check
      _
    $region11: #{tpu_custom_call.1} parent=1 // pred_check_branch
      %23 = sbr.rel (0) target = $region13
    $region12: #{tpu_custom_call.1} parent=1 // pred_region
      %24 = dma.done [#allocation3], 6144
    $region13: #{tpu_custom_call.1} parent=1 // pred_fallthru
      _
    %v25 = vld [vmem:[%s0] sm:$0xff]
    %v26 = vld [vmem:[#allocation2] sm:$0xff]
    %v27 = vlaneseq
    %v28 = vshrl.u32 %v27, 7
    %v29 = vsub.s32 4, %v28
    %v30 = vrot.slane %v26, %v29
    %vm31 = vcmask 31744
    %v33 = vsel %vm31, %v25, 0
    %vm35 = vcmask 1043456
    %v37 = vsel %vm35, %v26, 0
    %39 = vmatprep.subr.mxu0 0.0
    %40 = vmatpush1.msra.mxu0 0.0
    %41 = vmatprep.subr.mxu0 0.0
    %42 = vmatpush1.msra.mxu0 0.0
    %43 = vmatprep.subr.mxu0 0.0
    %44 = vmatpush1.msra.mxu0 0.0
    %45 = vmatprep.subr.mxu0 0.0
    %46 = vmatpush1.msra.mxu0 0.0
    %47 = vmatprep.subr.mxu0 0.0
    %48 = vmatpush1.msra.mxu0 0.0
    %49 = vmatprep.subr.mxu0 0.0
    %50 = vmatpush1.msra.mxu0 0.0
    %51 = vmatprep.subr.mxu0 0.0
    %52 = vmatpush1.msra.mxu0 0.0
    %53 = vmatprep.subr.mxu0 0.0
    %54 = vmatpush1.msra.mxu0 0.0
    %55 = vmatprep.subr.mxu0 0.0
    %56 = vmatpush1.msra.mxu0 0.0
    %57 = vmatprep.subr.mxu0 0.0
    %58 = vmatpush1.msra.mxu0 0.0
    %59 = vmatprep.subr.mxu0 0.0
    %60 = vmatpush1.msra.mxu0 0.0
    %61 = vmatprep.subr.mxu0 0.0
    %62 = vmatpush1.msra.mxu0 0.0
    %63 = vmatprep.subr.mxu0 0.0
    %64 = vmatpush1.msra.mxu0 0.0
    %65 = vmatprep.subr.mxu0 0.0
    %66 = vmatpush1.msra.mxu0 0.0
    %67 = vmatprep.subr.mxu0 0.0
    %68 = vmatpush1.msra.mxu0 0.0
    %69 = vmatprep.subr.mxu0 0.0
    %70 = vmatpush1.msra.mxu0 %v37
    %71 = vmatprep.subr.mxu0 0.0
    %72 = vmatpush2.msra.mxu0 0.0
    %73 = vmatprep.subr.mxu0 0.0
    %74 = vmatpush2.msra.mxu0 0.0
    %75 = vmatprep.subr.mxu0 0.0
    %76 = vmatpush2.msra.mxu0 0.0
    %77 = vmatprep.subr.mxu0 0.0
    %78 = vmatpush2.msra.mxu0 0.0
    %79 = vmatprep.subr.mxu0 0.0
    %80 = vmatpush2.msra.mxu0 0.0
    %81 = vmatprep.subr.mxu0 0.0
    %82 = vmatpush2.msra.mxu0 0.0
    %83 = vmatprep.subr.mxu0 0.0
    %84 = vmatpush2.msra.mxu0 0.0
    %85 = vmatprep.subr.mxu0 0.0
    %86 = vmatpush2.msra.mxu0 0.0
    %87 = vmatprep.subr.mxu0 0.0
    %88 = vmatpush2.msra.mxu0 0.0
    %89 = vmatprep.subr.mxu0 0.0
    %90 = vmatpush2.msra.mxu0 0.0
    %91 = vmatprep.subr.mxu0 0.0
    %92 = vmatpush2.msra.mxu0 0.0
    %93 = vmatprep.subr.mxu0 0.0
    %94 = vmatpush2.msra.mxu0 0.0
    %95 = vmatprep.subr.mxu0 0.0
    %96 = vmatpush2.msra.mxu0 0.0
    %97 = vmatprep.subr.mxu0 0.0
    %98 = vmatpush2.msra.mxu0 0.0
    %99 = vmatprep.subr.mxu0 0.0
    %100 = vmatpush2.msra.mxu0 0.0
    %101 = vmatprep.subr.mxu0 0.0
    %102 = vmatpush2.msra.mxu0 0.0
    %103 = vmatprep.mubr.f32.mxu0 0.0
    %104 = vmatmul.mubr.f32.gmra.mxu0 %v33
    %v105 = vpop.f32.mrf.mxu0
    %v106 = vadd.f32 %v30, %v105
    %v107 = vpop.f32.mrf.mxu0
    %108 = vdwg.mxu0
    %v109 = vmax.f32 %v106, 0.0
    %s110 = scalar_lea.vmem [#allocation2], 128
    %v111 = vld [vmem:[%s110] sm:$0xff]
    %v112 = vld [vmem:[%s110 + $0x8] sm:$0xff]
    %v113 = vld [vmem:[%s110 + $0x10] sm:$0xff]
    %v114 = vld [vmem:[%s110 + $0x18] sm:$0xff]
    %v115 = vld [vmem:[%s110 + $0x20] sm:$0xff]
    %v116 = vld [vmem:[%s110 + $0x28] sm:$0xff]
    %v117 = vld [vmem:[%s110 + $0x30] sm:$0xff]
    %v118 = vld [vmem:[%s110 + $0x38] sm:$0xff]
    %v119 = vld [vmem:[%s110 + $0x40] sm:$0xff]
    %v120 = vld [vmem:[%s110 + $0x48] sm:$0xff]
    %v121 = vld [vmem:[%s110 + $0x50] sm:$0xff]
    %v122 = vld [vmem:[%s110 + $0x58] sm:$0xff]
    %v123 = vld [vmem:[%s110 + $0x60] sm:$0xff]
    %v124 = vld [vmem:[%s110 + $0x68] sm:$0xff]
    %v125 = vld [vmem:[%s110 + $0x70] sm:$0xff]
    %v126 = vld [vmem:[%s110 + $0x78] sm:$0xff]
    %127 = vmatprep.subr.mxu0 0.0
    %128 = vmatpush1.msra.mxu0 %v126
    %129 = vmatprep.subr.mxu0 0.0
    %130 = vmatpush1.msra.mxu0 %v125
    %131 = vmatprep.subr.mxu0 0.0
    %132 = vmatpush1.msra.mxu0 %v124
    %133 = vmatprep.subr.mxu0 0.0
    %134 = vmatpush1.msra.mxu0 %v123
    %135 = vmatprep.subr.mxu0 0.0
    %136 = vmatpush1.msra.mxu0 %v122
    %137 = vmatprep.subr.mxu0 0.0
    %138 = vmatpush1.msra.mxu0 %v121
    %139 = vmatprep.subr.mxu0 0.0
    %140 = vmatpush1.msra.mxu0 %v120
    %141 = vmatprep.subr.mxu0 0.0
    %142 = vmatpush1.msra.mxu0 %v119
    %143 = vmatprep.subr.mxu0 0.0
    %144 = vmatpush1.msra.mxu0 %v118
    %145 = vmatprep.subr.mxu0 0.0
    %146 = vmatpush1.msra.mxu0 %v117
    %147 = vmatprep.subr.mxu0 0.0
    %148 = vmatpush1.msra.mxu0 %v116
    %149 = vmatprep.subr.mxu0 0.0
    %150 = vmatpush1.msra.mxu0 %v115
    %151 = vmatprep.subr.mxu0 0.0
    %152 = vmatpush1.msra.mxu0 %v114
    %153 = vmatprep.subr.mxu0 0.0
    %154 = vmatpush1.msra.mxu0 %v113
    %155 = vmatprep.subr.mxu0 0.0
    %156 = vmatpush1.msra.mxu0 %v112
    %157 = vmatprep.subr.mxu0 0.0
    %158 = vmatpush1.msra.mxu0 %v111
    %159 = vmatprep.subr.mxu0 0.0
    %160 = vmatpush2.msra.mxu0 0.0
    %161 = vmatprep.subr.mxu0 0.0
    %162 = vmatpush2.msra.mxu0 0.0
    %163 = vmatprep.subr.mxu0 0.0
    %164 = vmatpush2.msra.mxu0 0.0
    %165 = vmatprep.subr.mxu0 0.0
    %166 = vmatpush2.msra.mxu0 0.0
    %167 = vmatprep.subr.mxu0 0.0
    %168 = vmatpush2.msra.mxu0 0.0
    %169 = vmatprep.subr.mxu0 0.0
    %170 = vmatpush2.msra.mxu0 0.0
    %171 = vmatprep.subr.mxu0 0.0
    %172 = vmatpush2.msra.mxu0 0.0
    %173 = vmatprep.subr.mxu0 0.0
    %174 = vmatpush2.msra.mxu0 0.0
    %175 = vmatprep.subr.mxu0 0.0
    %176 = vmatpush2.msra.mxu0 0.0
    %177 = vmatprep.subr.mxu0 0.0
    %178 = vmatpush2.msra.mxu0 0.0
    %179 = vmatprep.subr.mxu0 0.0
    %180 = vmatpush2.msra.mxu0 0.0
    %181 = vmatprep.subr.mxu0 0.0
    %182 = vmatpush2.msra.mxu0 0.0
    %183 = vmatprep.subr.mxu0 0.0
    %184 = vmatpush2.msra.mxu0 0.0
    %185 = vmatprep.subr.mxu0 0.0
    %186 = vmatpush2.msra.mxu0 0.0
    %187 = vmatprep.subr.mxu0 0.0
    %188 = vmatpush2.msra.mxu0 0.0
    %189 = vmatprep.subr.mxu0 0.0
    %190 = vmatpush2.msra.mxu0 0.0
    %191 = vmatprep.mubr.f32.mxu0 0.0
    %192 = vmatmul.mubr.f32.gmra.mxu0 %v109
    %v193 = vpop.f32.mrf.mxu0
    %v194 = vadd.f32 0.0, %v193
    %v195 = vpop.f32.mrf.mxu0
    %196 = vdwg.mxu0
    %v197 = vmax.f32 %v194, 0.0
    %s198 = scalar_lea.vmem [#allocation2], 256
    %v199 = vld [vmem:[%s198] sm:$0xff]
    %v200 = vld [vmem:[%s198 + $0x8] sm:$0xff]
    %v201 = vld [vmem:[%s198 + $0x10] sm:$0xff]
    %v202 = vld [vmem:[%s198 + $0x18] sm:$0xff]
    %v203 = vld [vmem:[%s198 + $0x20] sm:$0xff]
    %v204 = vld [vmem:[%s198 + $0x28] sm:$0xff]
    %v205 = vld [vmem:[%s198 + $0x30] sm:$0xff]
    %v206 = vld [vmem:[%s198 + $0x38] sm:$0xff]
    %v207 = vld [vmem:[%s198 + $0x40] sm:$0xff]
    %v208 = vld [vmem:[%s198 + $0x48] sm:$0xff]
    %v209 = vld [vmem:[%s198 + $0x50] sm:$0xff]
    %v210 = vld [vmem:[%s198 + $0x58] sm:$0xff]
    %v211 = vld [vmem:[%s198 + $0x60] sm:$0xff]
    %v212 = vld [vmem:[%s198 + $0x68] sm:$0xff]
    %v213 = vld [vmem:[%s198 + $0x70] sm:$0xff]
    %v214 = vld [vmem:[%s198 + $0x78] sm:$0xff]
    %215 = vmatprep.subr.mxu0 0.0
    %216 = vmatpush1.msra.mxu0 %v214
    %217 = vmatprep.subr.mxu0 0.0
    %218 = vmatpush1.msra.mxu0 %v213
    %219 = vmatprep.subr.mxu0 0.0
    %220 = vmatpush1.msra.mxu0 %v212
    %221 = vmatprep.subr.mxu0 0.0
    %222 = vmatpush1.msra.mxu0 %v211
    %223 = vmatprep.subr.mxu0 0.0
    %224 = vmatpush1.msra.mxu0 %v210
    %225 = vmatprep.subr.mxu0 0.0
    %226 = vmatpush1.msra.mxu0 %v209
    %227 = vmatprep.subr.mxu0 0.0
    %228 = vmatpush1.msra.mxu0 %v208
    %229 = vmatprep.subr.mxu0 0.0
    %230 = vmatpush1.msra.mxu0 %v207
    %231 = vmatprep.subr.mxu0 0.0
    %232 = vmatpush1.msra.mxu0 %v206
    %233 = vmatprep.subr.mxu0 0.0
    %234 = vmatpush1.msra.mxu0 %v205
    %235 = vmatprep.subr.mxu0 0.0
    %236 = vmatpush1.msra.mxu0 %v204
    %237 = vmatprep.subr.mxu0 0.0
    %238 = vmatpush1.msra.mxu0 %v203
    %239 = vmatprep.subr.mxu0 0.0
    %240 = vmatpush1.msra.mxu0 %v202
    %241 = vmatprep.subr.mxu0 0.0
    %242 = vmatpush1.msra.mxu0 %v201
    %243 = vmatprep.subr.mxu0 0.0
    %244 = vmatpush1.msra.mxu0 %v200
    %245 = vmatprep.subr.mxu0 0.0
    %246 = vmatpush1.msra.mxu0 %v199
    %247 = vmatprep.subr.mxu0 0.0
    %248 = vmatpush2.msra.mxu0 0.0
    %249 = vmatprep.subr.mxu0 0.0
    %250 = vmatpush2.msra.mxu0 0.0
    %251 = vmatprep.subr.mxu0 0.0
    %252 = vmatpush2.msra.mxu0 0.0
    %253 = vmatprep.subr.mxu0 0.0
    %254 = vmatpush2.msra.mxu0 0.0
    %255 = vmatprep.subr.mxu0 0.0
    %256 = vmatpush2.msra.mxu0 0.0
    %257 = vmatprep.subr.mxu0 0.0
    %258 = vmatpush2.msra.mxu0 0.0
    %259 = vmatprep.subr.mxu0 0.0
    %260 = vmatpush2.msra.mxu0 0.0
    %261 = vmatprep.subr.mxu0 0.0
    %262 = vmatpush2.msra.mxu0 0.0
    %263 = vmatprep.subr.mxu0 0.0
    %264 = vmatpush2.msra.mxu0 0.0
    %265 = vmatprep.subr.mxu0 0.0
    %266 = vmatpush2.msra.mxu0 0.0
    %267 = vmatprep.subr.mxu0 0.0
    %268 = vmatpush2.msra.mxu0 0.0
    %269 = vmatprep.subr.mxu0 0.0
    %270 = vmatpush2.msra.mxu0 0.0
    %271 = vmatprep.subr.mxu0 0.0
    %272 = vmatpush2.msra.mxu0 0.0
    %273 = vmatprep.subr.mxu0 0.0
    %274 = vmatpush2.msra.mxu0 0.0
    %275 = vmatprep.subr.mxu0 0.0
    %276 = vmatpush2.msra.mxu0 0.0
    %277 = vmatprep.subr.mxu0 0.0
    %278 = vmatpush2.msra.mxu0 0.0
    %279 = vmatprep.mubr.f32.mxu0 0.0
    %280 = vmatmul.mubr.f32.gmra.mxu0 %v197
    %v281 = vpop.f32.mrf.mxu0
    %v282 = vadd.f32 0.0, %v281
    %v283 = vpop.f32.mrf.mxu0
    %284 = vdwg.mxu0
    %vm285 = vcmask 15360
    %286 = vst.msk [vmem:[%s2] sm:$0xff] %vm285, %v282
    // Predicated region
    $region14: #{tpu_custom_call.1} parent=1 // pred_check
      _
    $region15: #{tpu_custom_call.1} parent=1 // pred_check_branch
      %288 = sbr.rel (0) target = $region17
    $region16: #{tpu_custom_call.1} parent=1 // pred_region
      _
    $region17: #{tpu_custom_call.1} parent=1 // pred_fallthru
      _
    // Predicated region
    $region18: #{tpu_custom_call.1} parent=1 // pred_check
      _
    $region19: #{tpu_custom_call.1} parent=1 // pred_check_branch
      %290 = sbr.rel (0) target = $region21
    $region20: #{tpu_custom_call.1} parent=1 // pred_region
      _
    $region21: #{tpu_custom_call.1} parent=1 // pred_fallthru
      _
    %291 = vsyncpa [#allocation3], 1

</llo_original>
